<compile_context>
chip_gen: v7x
topology: tpu7x:2x2x1
jax: 0.10.0
libtpu: 0.0.40
codegen_flags: <defaults>
</compile_context>

<pallas_src>
import math

import jax
import jax.numpy as jnp
from jax.experimental import pallas as pl
from jax.experimental.pallas import tpu as pltpu


# ---------------------------------------------------------------------------
# Kernels
# ---------------------------------------------------------------------------

def _make_fused_kernel(flatten_first_mm):
    """Kernel: XW = X_tile @ sym(A) (once per (b, i), kept in VMEM scratch),
    then per-batch XW @ Y^T tiles for every Ny tile."""

    def kernel(x_ref, yt_ref, a_ref, o_ref, xw_ref):
        j = pl.program_id(2)                 # Ny-tile axis (innermost, serial)
        bb, tm, d = x_ref.shape              # static

        @pl.when(j == 0)
        def _():
            a = a_ref[...]                   # load sym(A) once per (b, i)
            if flatten_first_mm:
                # One (bb*tm, d) @ (d, d) matmul instead of bb tiny ones
                # (leading-dim merge only; tm is sublane-aligned -> layout-free).
                x_flat = x_ref[...].reshape(bb * tm, d)
                xw = jnp.dot(x_flat, a, preferred_element_type=jnp.float32)
                xw_ref[...] = xw.reshape(bb, tm, d).astype(xw_ref.dtype)
            else:
                for b in range(bb):
                    xw = jnp.dot(x_ref[b], a, preferred_element_type=jnp.float32)
                    xw_ref[b] = xw.astype(xw_ref.dtype)

        # (tm, d) @ (d, tn): plain MXU contraction (Y pre-transposed in the
        # wrapper, so no XLU transpose here), f32 accumulation.
        for b in range(bb):
            m = jnp.dot(xw_ref[b], yt_ref[b], preferred_element_type=jnp.float32)
            o_ref[b] = m.astype(o_ref.dtype)

    return kernel


def _xw_kernel(xw_ref, yt_ref, o_ref):
    """Pre-projected path: XW = X @ sym(A) was computed in the wrapper; the
    kernel is a pure batched (tm, d) @ (d, tn) matmul, all grid axes parallel."""
    bb = xw_ref.shape[0]
    for b in range(bb):
        m = jnp.dot(xw_ref[b], yt_ref[b], preferred_element_type=jnp.float32)
        o_ref[b] = m.astype(o_ref.dtype)


# ---------------------------------------------------------------------------
# Wrapper
# ---------------------------------------------------------------------------

def _cdiv(a, b):
    return -(-a // b)


def _largest_divisor_leq(n, cap):
    cap = max(1, min(n, cap))
    for c in range(cap, 0, -1):
        if n % c == 0:
            return c
    return 1


def _tpu_vmem_capacity_bytes():
    try:
        return int(pltpu.get_tpu_info().vmem_capacity_bytes)
    except Exception:
        return 128 * 1024 * 1024   # conservative v5e/v6e default


def affinity(X, Y, A, *, tm=None, tn=None, bb=None, out_dtype=None,
             hoist_xw=None, vmem_limit_bytes=None):
    """X: (B, Nx, d), Y: (B, Ny, d), A: (d, d) -> (B, Nx, Ny).

    `out_dtype` defaults to X.dtype (module semantics); pass jnp.bfloat16 to
    halve the dominant HBM writeback stream if the consumer tolerates it.
    """
    B, Nx, d = X.shape
    B_y, Ny, d_y = Y.shape
    assert B == B_y and d == d_y and A.shape == (d, d)
    out_dtype = jnp.dtype(X.dtype if out_dtype is None else out_dtype)

    vmem_cap = _tpu_vmem_capacity_bytes()
    # Generation-aware tile defaults: v7x-class (<=80 MiB VMEM, ~3.2 TB/s HBM)
    # wants wider output tiles to amortize per-step overhead; v5e/v6e keep 512.
    if tm is None:
        tm = 512
    if tn is None:
        tn = 1024 if vmem_cap <= 80 * 1024 * 1024 else 512

    # sym(A) never changes across grid steps -> hoist out of the kernel.
    A_sym = ((A + A.T) * 0.5).astype(X.dtype)
    # Pre-transpose Y to (B, d, Ny): plain (TM,d)@(d,TN) contraction in-kernel
    # and lane-dense Y tiles (TN lanes instead of d).
    Yt = jnp.swapaxes(Y, 1, 2)

    # ---- tile sizes (no padding; ragged last tiles are masked by Pallas) ---
    sub = 16 if X.dtype == jnp.bfloat16 else 8
    if Nx <= tm:
        tm_eff = Nx                                  # full-extent block
    else:
        tm_eff = max(sub, (tm // sub) * sub)         # sublane-aligned
    if Ny <= tn:
        tn_eff = Ny                                  # full-extent block
    else:
        tn_eff = max(128, (tn // 128) * 128)         # lane-dense stores

    gi = _cdiv(Nx, tm_eff)
    gj = _cdiv(Ny, tn_eff)

    # ---- batch packing: amortize per-step overhead when tiles are tiny -----
    if bb is None:
        if tm_eff * tn_eff < 128 * 128:
            cap = (128 * 128) // max(tm_eff * tn_eff, 1)
            bb = _largest_divisor_leq(B, cap)
        else:
            bb = 1
    assert B % bb == 0
    gb = B // bb
    grid = (gb, gi, gj)

    # ---- fused vs pre-projected path ---------------------------------------
    # With a single (batch, Nx) block the scratch-reuse (serial Ny) axis would
    # leave one v7x TensorCore idle; hoist XW so all axes are parallel.
    if hoist_xw is None:
        hoist_xw = (gb * gi == 1) and (gj >= 2)

    # ---- explicit VMEM budget (double-buffered tiles + scratch) ------------
    in_b = jnp.dtype(X.dtype).itemsize
    out_b = out_dtype.itemsize
    footprint = (2 * bb * tm_eff * tn_eff * out_b      # output tiles
                 + 2 * bb * tm_eff * d * in_b          # X / XW tiles
                 + 2 * bb * d * tn_eff * in_b)         # Y^T tiles
    if not hoist_xw:
        footprint += 2 * d * d * in_b                  # A tiles
        footprint += bb * tm_eff * d * in_b            # XW scratch
    if footprint + 8 * 1024 * 1024 > vmem_cap:
        raise ValueError(
            f"affinity tile config needs ~{footprint >> 20} MiB VMEM but chip "
            f"has {vmem_cap >> 20} MiB; reduce tm/tn/bb.")
    if vmem_limit_bytes is None:
        vmem_limit_bytes = int(min(vmem_cap,
                                   max(32 * 1024 * 1024,
                                       footprint + 16 * 1024 * 1024)))

    # ---- scheduler hint ------------------------------------------------------
    flops = 2 * B * Nx * d * d + 2 * B * Nx * Ny * d
    bytes_accessed = (X.size + Y.size + A_sym.size) * in_b + B * Nx * Ny * out_b
    cost = pl.CostEstimate(flops=flops, transcendentals=0,
                           bytes_accessed=bytes_accessed)

    out_shape = jax.ShapeDtypeStruct((B, Nx, Ny), out_dtype)

    if hoist_xw:
        # One cheap XLA matmul (B*Nx*d elements) -- negligible vs the output.
        XW = jnp.matmul(X, A_sym,
                        preferred_element_type=jnp.float32).astype(X.dtype)
        grid_spec = pltpu.PrefetchScalarGridSpec(
            num_scalar_prefetch=0,
            grid=grid,
            in_specs=[
                pl.BlockSpec((bb, tm_eff, d), lambda b, i, j: (b, i, 0)),
                pl.BlockSpec((bb, d, tn_eff), lambda b, i, j: (b, 0, j)),
            ],
            out_specs=pl.BlockSpec((bb, tm_eff, tn_eff),
                                   lambda b, i, j: (b, i, j)),
        )
        out = pl.pallas_call(
            _xw_kernel,
            out_shape=out_shape,
            grid_spec=grid_spec,
            compiler_params=pltpu.CompilerParams(
                dimension_semantics=("parallel", "parallel", "parallel"),
                vmem_limit_bytes=vmem_limit_bytes,
            ),
            cost_estimate=cost,
        )(XW, Yt)
    else:
        flatten_first_mm = (bb > 1) and (tm_eff % sub == 0)
        kernel = _make_fused_kernel(flatten_first_mm)
        grid_spec = pltpu.PrefetchScalarGridSpec(
            num_scalar_prefetch=0,
            grid=grid,
            in_specs=[
                pl.BlockSpec((bb, tm_eff, d), lambda b, i, j: (b, i, 0)),
                pl.BlockSpec((bb, d, tn_eff), lambda b, i, j: (b, 0, j)),
                pl.BlockSpec((d, d), lambda b, i, j: (0, 0)),
            ],
            out_specs=pl.BlockSpec((bb, tm_eff, tn_eff),
                                   lambda b, i, j: (b, i, j)),
            # Scratch holds X_tile @ sym(A) in the input dtype so bf16 inputs
            # feed the second matmul on the fast MXU path.
            scratch_shapes=[pltpu.VMEM((bb, tm_eff, d), X.dtype)],
        )
        out = pl.pallas_call(
            kernel,
            out_shape=out_shape,
            grid_spec=grid_spec,
            compiler_params=pltpu.CompilerParams(
                dimension_semantics=("parallel", "parallel", "arbitrary"),
                vmem_limit_bytes=vmem_limit_bytes,
            ),
            cost_estimate=cost,
        )(X, Yt, A_sym)

    return out


# ---------------------------------------------------------------------------
# Parameter init + reference
# ---------------------------------------------------------------------------

def init_params(key, d, dtype=jnp.float32):
    """Re-implementation of Affinity.reset_parameters."""
    stdv = 1.0 / math.sqrt(d)
    A = jax.random.uniform(key, (d, d), dtype, -stdv, stdv)
    return A + jnp.eye(d, dtype=dtype)


def affinity_ref(X, Y, A):
    A_s = (A + A.T) / 2
    return jnp.matmul(jnp.matmul(X, A_s), jnp.swapaxes(Y, 1, 2))


if __name__ == "__main__":
    key = jax.random.PRNGKey(0)
    k1, k2, k3, k4, k5, k6, k7, k8, k9 = jax.random.split(key, 9)

    # Case 1: tiny shapes (batch=2, Nx=Ny=8, d=32): whole batch packed into a
    # single grid step (bb=2), fused (bb*TM, d) @ (d, d) first matmul.
    d = 32
    X = jax.random.normal(k1, (2, 8, d), jnp.float32)
    Y = jax.random.normal(k2, (2, 8, d), jnp.float32)
    A = init_params(k3, d)
    out = jax.block_until_ready(affinity(X, Y, A))
    ref = affinity_ref(X, Y, A)
    assert out.shape == ref.shape == (2, 8, 8)
    assert jnp.allclose(out, ref, atol=1e-4, rtol=1e-4), "case 1 mismatch"

    # Case 2: tiled (b, i, j) grid, XW-scratch reuse across Ny tiles, and the
    # no-padding ragged-tile path (Nx=200 is not a multiple of tm=128).
    d = 64
    X = jax.random.normal(k4, (2, 200, d), jnp.float32)
    Y = jax.random.normal(k5, (2, 384, d), jnp.float32)
    A = init_params(k6, d)
    out = jax.block_until_ready(affinity(X, Y, A, tm=128, tn=128))
    ref = affinity_ref(X, Y, A)
    assert out.shape == ref.shape == (2, 200, 384)
    assert jnp.allclose(out, ref, atol=5e-3, rtol=5e-3), "case 2 mismatch"

    # Case 3: single (batch, Nx) block with several Ny blocks -> pre-projected
    # path (XW hoisted to the wrapper, all grid axes parallel).
    d = 32
    X = jax.random.normal(k7, (1, 64, d), jnp.float32)
    Y = jax.random.normal(k8, (1, 512, d), jnp.float32)
    A = init_params(k9, d)
    out = jax.block_until_ready(affinity(X, Y, A, tm=128, tn=128))
    ref = affinity_ref(X, Y, A)
    assert out.shape == ref.shape == (1, 64, 512)
    assert jnp.allclose(out, ref, atol=1e-3, rtol=1e-3), "case 3 mismatch"

    print("KERNEL_OK")
</pallas_src>

<mosaic_0001>
module attributes {stable_mosaic.version = 11 : i64} {
  func.func @kernel(%arg0: i32, %arg1: i32, %arg2: i32, %arg3: memref<2x8x32xf32, #tpu.memory_space<vmem>>, %arg4: memref<2x32x8xf32, #tpu.memory_space<vmem>>, %arg5: memref<32x32xf32, #tpu.memory_space<vmem>>, %arg6: memref<2x8x8xf32, #tpu.memory_space<vmem>>, %arg7: memref<2x8x32xf32, #tpu.memory_space<vmem>>) attributes {dimension_semantics = [#tpu.dimension_semantics<parallel>, #tpu.dimension_semantics<parallel>, #tpu.dimension_semantics<arbitrary>], iteration_bounds = array<i64: 1, 1, 1>, scalar_prefetch = 0 : i64, scratch_operands = 1 : i64, tpu.core_type = #tpu.core_type<tc>, window_params = [{transform_indices = @transform_0, window_bounds = array<i64: 2, 8, 32>}, {transform_indices = @transform_1, window_bounds = array<i64: 2, 32, 8>}, {pipeline_mode = #tpu.pipeline_mode<synchronous>, transform_indices = @transform_2, window_bounds = array<i64: 32, 32>}, {transform_indices = @transform_3, window_bounds = array<i64: 2, 8, 8>}]} {
    %c0_i32 = arith.constant 0 : i32
    %0 = arith.cmpi eq, %arg2, %c0_i32 : i32
    %1 = arith.extui %0 : i1 to i32
    %c0_i32_0 = arith.constant 0 : i32
    %2 = arith.cmpi ne, %1, %c0_i32_0 : i32
    scf.if %2 {
      %c0_18 = arith.constant 0 : index
      %c0_19 = arith.constant 0 : index
      %19 = vector.load %arg5[%c0_18, %c0_19] : memref<32x32xf32, #tpu.memory_space<vmem>>, vector<32x32xf32>
      %c0_20 = arith.constant 0 : index
      %c0_21 = arith.constant 0 : index
      %c0_22 = arith.constant 0 : index
      %20 = vector.load %arg3[%c0_20, %c0_21, %c0_22] : memref<2x8x32xf32, #tpu.memory_space<vmem>>, vector<2x8x32xf32>
      %21 = vector.shape_cast %20 : vector<2x8x32xf32> to vector<16x32xf32>
      %cst_23 = arith.constant dense<0.000000e+00> : vector<16x32xf32>
      %22 = tpu.matmul %21, %19, %cst_23 {dimension_numbers = #tpu.dot_dimension_numbers<[1], [0], [0], [1], [0, 0, 1, 1], [], []>} : vector<16x32xf32>, vector<32x32xf32>, vector<16x32xf32> -> vector<16x32xf32>
      %23 = vector.shape_cast %22 : vector<16x32xf32> to vector<2x8x32xf32>
      %c0_24 = arith.constant 0 : index
      %c0_25 = arith.constant 0 : index
      %c0_26 = arith.constant 0 : index
      %24 = vector.load %arg7[%c0_24, %c0_25, %c0_26] : memref<2x8x32xf32, #tpu.memory_space<vmem>>, vector<2x8x32xf32>
      tpu.vector_store %arg7[%c0_24, %c0_25, %c0_26], %23 {strides = array<i32>} : memref<2x8x32xf32, #tpu.memory_space<vmem>>, vector<2x8x32xf32>,
    } else {
    }
    %c0 = arith.constant 0 : index
    %c0_1 = arith.constant 0 : index
    %c0_2 = arith.constant 0 : index
    %3 = vector.load %arg7[%c0, %c0_1, %c0_2] : memref<2x8x32xf32, #tpu.memory_space<vmem>>, vector<1x8x32xf32>
    %4 = vector.shape_cast %3 : vector<1x8x32xf32> to vector<8x32xf32>
    %c0_3 = arith.constant 0 : index
    %c0_4 = arith.constant 0 : index
    %c0_5 = arith.constant 0 : index
    %5 = vector.load %arg4[%c0_3, %c0_4, %c0_5] : memref<2x32x8xf32, #tpu.memory_space<vmem>>, vector<1x32x8xf32>
    %6 = vector.shape_cast %5 : vector<1x32x8xf32> to vector<32x8xf32>
    %cst = arith.constant dense<0.000000e+00> : vector<8x8xf32>
    %7 = tpu.matmul %4, %6, %cst {dimension_numbers = #tpu.dot_dimension_numbers<[1], [0], [0], [1], [0, 0, 1, 1], [], []>} : vector<8x32xf32>, vector<32x8xf32>, vector<8x8xf32> -> vector<8x8xf32>
    %c0_6 = arith.constant 0 : index
    %c0_7 = arith.constant 0 : index
    %c0_8 = arith.constant 0 : index
    %8 = vector.load %arg6[%c0_6, %c0_7, %c0_8] : memref<2x8x8xf32, #tpu.memory_space<vmem>>, vector<1x8x8xf32>
    %9 = vector.shape_cast %8 : vector<1x8x8xf32> to vector<8x8xf32>
    %10 = vector.shape_cast %7 : vector<8x8xf32> to vector<1x8x8xf32>
    tpu.vector_store %arg6[%c0_6, %c0_7, %c0_8], %10 {strides = array<i32>} : memref<2x8x8xf32, #tpu.memory_space<vmem>>, vector<1x8x8xf32>,
    %c1 = arith.constant 1 : index
    %c0_9 = arith.constant 0 : index
    %c0_10 = arith.constant 0 : index
    %11 = vector.load %arg7[%c1, %c0_9, %c0_10] : memref<2x8x32xf32, #tpu.memory_space<vmem>>, vector<1x8x32xf32>
    %12 = vector.shape_cast %11 : vector<1x8x32xf32> to vector<8x32xf32>
    %c1_11 = arith.constant 1 : index
    %c0_12 = arith.constant 0 : index
    %c0_13 = arith.constant 0 : index
    %13 = vector.load %arg4[%c1_11, %c0_12, %c0_13] : memref<2x32x8xf32, #tpu.memory_space<vmem>>, vector<1x32x8xf32>
    %14 = vector.shape_cast %13 : vector<1x32x8xf32> to vector<32x8xf32>
    %cst_14 = arith.constant dense<0.000000e+00> : vector<8x8xf32>
    %15 = tpu.matmul %12, %14, %cst_14 {dimension_numbers = #tpu.dot_dimension_numbers<[1], [0], [0], [1], [0, 0, 1, 1], [], []>} : vector<8x32xf32>, vector<32x8xf32>, vector<8x8xf32> -> vector<8x8xf32>
    %c1_15 = arith.constant 1 : index
    %c0_16 = arith.constant 0 : index
    %c0_17 = arith.constant 0 : index
    %16 = vector.load %arg6[%c1_15, %c0_16, %c0_17] : memref<2x8x8xf32, #tpu.memory_space<vmem>>, vector<1x8x8xf32>
    %17 = vector.shape_cast %16 : vector<1x8x8xf32> to vector<8x8xf32>
    %18 = vector.shape_cast %15 : vector<8x8xf32> to vector<1x8x8xf32>
    tpu.vector_store %arg6[%c1_15, %c0_16, %c0_17], %18 {strides = array<i32>} : memref<2x8x8xf32, #tpu.memory_space<vmem>>, vector<1x8x8xf32>,
    return
  }
  func.func @transform_0(%arg0: i32, %arg1: i32, %arg2: i32) -> (i32, i32, i32) {
    %c0_i32 = arith.constant 0 : i32
    %c0_i32_0 = arith.constant 0 : i32
    return %arg0, %arg1, %c0_i32 : i32, i32, i32
  }
  func.func @transform_1(%arg0: i32, %arg1: i32, %arg2: i32) -> (i32, i32, i32) {
    %c0_i32 = arith.constant 0 : i32
    %c0_i32_0 = arith.constant 0 : i32
    return %arg0, %c0_i32, %arg2 : i32, i32, i32
  }
  func.func @transform_2(%arg0: i32, %arg1: i32, %arg2: i32) -> (i32, i32) {
    %c0_i32 = arith.constant 0 : i32
    %c0_i32_0 = arith.constant 0 : i32
    %c0_i32_1 = arith.constant 0 : i32
    return %c0_i32, %c0_i32_0 : i32, i32
  }
  func.func @transform_3(%arg0: i32, %arg1: i32, %arg2: i32) -> (i32, i32, i32) {
    %c0_i32 = arith.constant 0 : i32
    return %arg0, %arg1, %arg2 : i32, i32, i32
  }
}

</mosaic_0001>

<llo_original>
// kernel: tpu_custom_call.1
$region0: #{tpu_custom_call.1}
  #allocation0 [shape = 'u32[]', space=smem, size = 0x4, offset = 0x4, fixed_abs, tag = 'smem constant byte address 0x4 - core index']
  #allocation1 [shape = 'u32[144,128]{1,0:T(1,128)}', space=vmem, size = 0x12000, scoped, tag = 'internal scratch']
  #allocation2 [shape = 'f32[2,8,32]{2,1,0:T(8,128)}', space=vmem, size = 0x2000, scoped, tag = 'scratch operand']
  %s0 = inlined_call_operand.vmem [shape: f32[2,8,32], index: 0, kind: input, shape index: {}]
  %s1 = inlined_call_operand.vmem [shape: f32[2,32,8], index: 1, kind: input, shape index: {}]
  %s2 = inlined_call_operand.vmem [shape: f32[32,32], index: 2, kind: input, shape index: {}]
  %s3 = inlined_call_operand.hbm [shape: f32[2,8,8], index: 3, kind: output, shape index: {}]
  %s4 = sld [smem:[#allocation0]]
  $region26: #{tpu_custom_call.1} parent=0
    _
  %s6 = ssub.s32 1, %s4
  %s7 = scalar_select 0, %s6, %s4
  $region1: #{tpu_custom_call.1} parent=0
    #allocation3 [shape = 'u8[8192]{0}', space=vmem, size = 0x2000, scoped, tag = 'output window, operand 0, single buffered']
    #allocation4 [shape = 's32[1]{0}', space=sflag, size = 0x4, scoped, tag = 'scoped memory for tpu_custom_call.1']
    %8 = vsyncpa [#allocation4], 0
    // Predicated region
    $region2: #{tpu_custom_call.1} parent=1 // pred_check
      _
    $region3: #{tpu_custom_call.1} parent=1 // pred_check_branch
      %10 = sbr.rel (0) target = $region5
    $region4: #{tpu_custom_call.1} parent=1 // pred_region
      _
    $region5: #{tpu_custom_call.1} parent=1 // pred_fallthru
      _
    // Predicated region
    $region6: #{tpu_custom_call.1} parent=1 // pred_check
      _
    $region7: #{tpu_custom_call.1} parent=1 // pred_check_branch
      %12 = sbr.rel (0) target = $region9
    $region8: #{tpu_custom_call.1} parent=1 // pred_region
      _
    $region9: #{tpu_custom_call.1} parent=1 // pred_fallthru
      _
    // Predicated region
    $region10: #{tpu_custom_call.1} parent=1 // pred_check
      _
    $region11: #{tpu_custom_call.1} parent=1 // pred_check_branch
      %14 = sbr.rel (0) target = $region13
    $region12: #{tpu_custom_call.1} parent=1 // pred_region
      _
    $region13: #{tpu_custom_call.1} parent=1 // pred_fallthru
      _
    %p15 = scmp.eq.s32.totalorder 0, 0
    // Predicated region
    $region14: #{tpu_custom_call.1} parent=1 // pred_check
      %p16 = pneg %p15
    $region15: #{tpu_custom_call.1} parent=1 // pred_check_branch
      %18 = sbr.rel (%p16) target = $region17
    $region16: #{tpu_custom_call.1} parent=1 // pred_region
      %v19 = vld [vmem:[%s2] sm:$0xff]
      %v20 = vld [vmem:[%s2 + $0x8] sm:$0xff]
      %v21 = vld [vmem:[%s2 + $0x10] sm:$0xff]
      %v22 = vld [vmem:[%s2 + $0x18] sm:$0xff]
      %v23 = vld [vmem:[%s0] sm:$0xff]
      %v24 = vld [vmem:[%s0 + $0x8] sm:$0xff]
      %vm25 = vcmask 261120
      %v27 = vsel %vm25, %v23, 0
      %v30 = vsel %vm25, %v24, 0
      %32 = vmatprep.subr.mxu0 0.0
      %33 = vmatpush1.msra.mxu0 %v19
      %34 = vmatprep.subr.mxu0 0.0
      %35 = vmatpush1.msra.mxu0 %v20
      %36 = vmatprep.subr.mxu0 0.0
      %37 = vmatpush1.msra.mxu0 %v21
      %38 = vmatprep.subr.mxu0 0.0
      %39 = vmatpush1.msra.mxu0 %v22
      %40 = vmatprep.subr.mxu0 0.0
      %41 = vmatpush1.msra.mxu0 0.0
      %42 = vmatprep.subr.mxu0 0.0
      %43 = vmatpush1.msra.mxu0 0.0
      %44 = vmatprep.subr.mxu0 0.0
      %45 = vmatpush1.msra.mxu0 0.0
      %46 = vmatprep.subr.mxu0 0.0
      %47 = vmatpush1.msra.mxu0 0.0
      %48 = vmatprep.subr.mxu0 0.0
      %49 = vmatpush1.msra.mxu0 0.0
      %50 = vmatprep.subr.mxu0 0.0
      %51 = vmatpush1.msra.mxu0 0.0
      %52 = vmatprep.subr.mxu0 0.0
      %53 = vmatpush1.msra.mxu0 0.0
      %54 = vmatprep.subr.mxu0 0.0
      %55 = vmatpush1.msra.mxu0 0.0
      %56 = vmatprep.subr.mxu0 0.0
      %57 = vmatpush1.msra.mxu0 0.0
      %58 = vmatprep.subr.mxu0 0.0
      %59 = vmatpush1.msra.mxu0 0.0
      %60 = vmatprep.subr.mxu0 0.0
      %61 = vmatpush1.msra.mxu0 0.0
      %62 = vmatprep.subr.mxu0 0.0
      %63 = vmatpush1.msra.mxu0 0.0
      %64 = vmatprep.subr.mxu0 0.0
      %65 = vmatpush1.msra.mxu0 0.0
      %66 = vmatprep.subr.mxu0 0.0
      %67 = vmatpush1.msra.mxu0 0.0
      %68 = vmatprep.subr.mxu0 0.0
      %69 = vmatpush1.msra.mxu0 0.0
      %70 = vmatprep.subr.mxu0 0.0
      %71 = vmatpush1.msra.mxu0 0.0
      %72 = vmatprep.subr.mxu0 0.0
      %73 = vmatpush1.msra.mxu0 0.0
      %74 = vmatprep.subr.mxu0 0.0
      %75 = vmatpush1.msra.mxu0 0.0
      %76 = vmatprep.subr.mxu0 0.0
      %77 = vmatpush1.msra.mxu0 0.0
      %78 = vmatprep.subr.mxu0 0.0
      %79 = vmatpush1.msra.mxu0 0.0
      %80 = vmatprep.subr.mxu0 0.0
      %81 = vmatpush1.msra.mxu0 0.0
      %82 = vmatprep.subr.mxu0 0.0
      %83 = vmatpush1.msra.mxu0 0.0
      %84 = vmatprep.subr.mxu0 0.0
      %85 = vmatpush1.msra.mxu0 0.0
      %86 = vmatprep.subr.mxu0 0.0
      %87 = vmatpush1.msra.mxu0 0.0
      %88 = vmatprep.subr.mxu0 0.0
      %89 = vmatpush1.msra.mxu0 0.0
      %90 = vmatprep.subr.mxu0 0.0
      %91 = vmatpush1.msra.mxu0 0.0
      %92 = vmatprep.subr.mxu0 0.0
      %93 = vmatpush1.msra.mxu0 0.0
      %94 = vmatprep.subr.mxu0 0.0
      %95 = vmatpush1.msra.mxu0 0.0
      %96 = vmatprep.mubr.f32.mxu0 0.0
      %97 = vmatmul.mubr.f32.gmra.mrb[0].mxu0 %v27
      %v98 = vpop.f32.mrb[0].mxu0
      %v99 = vadd.f32 0.0, %v98
      %v100 = vpop.f32.mrb[0].mxu0
      %101 = vmatprep.mubr.f32.mxu0 0.0
      %102 = vmatmul.mubr.f32.gmra.mrb[0].mxu0 %v30
      %v103 = vpop.f32.mrb[0].mxu0
      %v104 = vadd.f32 0.0, %v103
      %v105 = vpop.f32.mrb[0].mxu0
      %106 = vdwg.mxu0
      %107 = vst.msk [vmem:[#allocation2] sm:$0xff] %vm25, %v99
      %108 = vst.msk [vmem:[#allocation2 + $0x8] sm:$0xff] %vm25, %v104
    $region17: #{tpu_custom_call.1} parent=1 // pred_fallthru
      _
    %v109 = vld [vmem:[#allocation2] sm:$0xff]
    %v110 = vld [vmem:[%s1] sm:$0xff]
    %v111 = vld [vmem:[%s1 + $0x8] sm:$0xff]
    %v112 = vld [vmem:[%s1 + $0x10] sm:$0xff]
    %v113 = vld [vmem:[%s1 + $0x18] sm:$0xff]
    %vm114 = vcmask 261120
    %v116 = vsel %vm114, %v109, 0
    %118 = vmatprep.subr.mxu0 0.0
    %119 = vmatpush1.msra.mxu0 %v110
    %120 = vmatprep.subr.mxu0 0.0
    %121 = vmatpush1.msra.mxu0 %v111
    %122 = vmatprep.subr.mxu0 0.0
    %123 = vmatpush1.msra.mxu0 %v112
    %124 = vmatprep.subr.mxu0 0.0
    %125 = vmatpush1.msra.mxu0 %v113
    %126 = vmatprep.subr.mxu0 0.0
    %127 = vmatpush1.msra.mxu0 0.0
    %128 = vmatprep.subr.mxu0 0.0
    %129 = vmatpush1.msra.mxu0 0.0
    %130 = vmatprep.subr.mxu0 0.0
    %131 = vmatpush1.msra.mxu0 0.0
    %132 = vmatprep.subr.mxu0 0.0
    %133 = vmatpush1.msra.mxu0 0.0
    %134 = vmatprep.subr.mxu0 0.0
    %135 = vmatpush1.msra.mxu0 0.0
    %136 = vmatprep.subr.mxu0 0.0
    %137 = vmatpush1.msra.mxu0 0.0
    %138 = vmatprep.subr.mxu0 0.0
    %139 = vmatpush1.msra.mxu0 0.0
    %140 = vmatprep.subr.mxu0 0.0
    %141 = vmatpush1.msra.mxu0 0.0
    %142 = vmatprep.subr.mxu0 0.0
    %143 = vmatpush1.msra.mxu0 0.0
    %144 = vmatprep.subr.mxu0 0.0
    %145 = vmatpush1.msra.mxu0 0.0
    %146 = vmatprep.subr.mxu0 0.0
    %147 = vmatpush1.msra.mxu0 0.0
    %148 = vmatprep.subr.mxu0 0.0
    %149 = vmatpush1.msra.mxu0 0.0
    %150 = vmatprep.subr.mxu0 0.0
    %151 = vmatpush1.msra.mxu0 0.0
    %152 = vmatprep.subr.mxu0 0.0
    %153 = vmatpush1.msra.mxu0 0.0
    %154 = vmatprep.subr.mxu0 0.0
    %155 = vmatpush1.msra.mxu0 0.0
    %156 = vmatprep.subr.mxu0 0.0
    %157 = vmatpush1.msra.mxu0 0.0
    %158 = vmatprep.subr.mxu0 0.0
    %159 = vmatpush1.msra.mxu0 0.0
    %160 = vmatprep.subr.mxu0 0.0
    %161 = vmatpush1.msra.mxu0 0.0
    %162 = vmatprep.subr.mxu0 0.0
    %163 = vmatpush1.msra.mxu0 0.0
    %164 = vmatprep.subr.mxu0 0.0
    %165 = vmatpush1.msra.mxu0 0.0
    %166 = vmatprep.subr.mxu0 0.0
    %167 = vmatpush1.msra.mxu0 0.0
    %168 = vmatprep.subr.mxu0 0.0
    %169 = vmatpush1.msra.mxu0 0.0
    %170 = vmatprep.subr.mxu0 0.0
    %171 = vmatpush1.msra.mxu0 0.0
    %172 = vmatprep.subr.mxu0 0.0
    %173 = vmatpush1.msra.mxu0 0.0
    %174 = vmatprep.subr.mxu0 0.0
    %175 = vmatpush1.msra.mxu0 0.0
    %176 = vmatprep.subr.mxu0 0.0
    %177 = vmatpush1.msra.mxu0 0.0
    %178 = vmatprep.subr.mxu0 0.0
    %179 = vmatpush1.msra.mxu0 0.0
    %180 = vmatprep.subr.mxu0 0.0
    %181 = vmatpush1.msra.mxu0 0.0
    %182 = vmatprep.mubr.f32.mxu0 0.0
    %183 = vmatmul.mubr.f32.gmra.mrb[0].mxu0 %v116
    %v184 = vpop.f32.mrb[0].mxu0
    %v185 = vadd.f32 0.0, %v184
    %v186 = vpop.f32.mrb[0].mxu0
    %187 = vdwg.mxu0
    %vm188 = vcmask 64512
    %189 = vst.msk [vmem:[#allocation3] sm:$0xff] %vm188, %v185
    %s190 = scalar_lea.vmem [#allocation2], 8
    %v191 = vld [vmem:[%s190] sm:$0xff]
    %s192 = scalar_lea.vmem %s1, 32
    %v193 = vld [vmem:[%s192] sm:$0xff]
    %v194 = vld [vmem:[%s192 + $0x8] sm:$0xff]
    %v195 = vld [vmem:[%s192 + $0x10] sm:$0xff]
    %v196 = vld [vmem:[%s192 + $0x18] sm:$0xff]
    %v198 = vsel %vm114, %v191, 0
    %200 = vmatprep.subr.mxu0 0.0
    %201 = vmatpush1.msra.mxu0 %v193
    %202 = vmatprep.subr.mxu0 0.0
    %203 = vmatpush1.msra.mxu0 %v194
    %204 = vmatprep.subr.mxu0 0.0
    %205 = vmatpush1.msra.mxu0 %v195
    %206 = vmatprep.subr.mxu0 0.0
    %207 = vmatpush1.msra.mxu0 %v196
    %208 = vmatprep.subr.mxu0 0.0
    %209 = vmatpush1.msra.mxu0 0.0
    %210 = vmatprep.subr.mxu0 0.0
    %211 = vmatpush1.msra.mxu0 0.0
    %212 = vmatprep.subr.mxu0 0.0
    %213 = vmatpush1.msra.mxu0 0.0
    %214 = vmatprep.subr.mxu0 0.0
    %215 = vmatpush1.msra.mxu0 0.0
    %216 = vmatprep.subr.mxu0 0.0
    %217 = vmatpush1.msra.mxu0 0.0
    %218 = vmatprep.subr.mxu0 0.0
    %219 = vmatpush1.msra.mxu0 0.0
    %220 = vmatprep.subr.mxu0 0.0
    %221 = vmatpush1.msra.mxu0 0.0
    %222 = vmatprep.subr.mxu0 0.0
    %223 = vmatpush1.msra.mxu0 0.0
    %224 = vmatprep.subr.mxu0 0.0
    %225 = vmatpush1.msra.mxu0 0.0
    %226 = vmatprep.subr.mxu0 0.0
    %227 = vmatpush1.msra.mxu0 0.0
    %228 = vmatprep.subr.mxu0 0.0
    %229 = vmatpush1.msra.mxu0 0.0
    %230 = vmatprep.subr.mxu0 0.0
    %231 = vmatpush1.msra.mxu0 0.0
    %232 = vmatprep.subr.mxu0 0.0
    %233 = vmatpush1.msra.mxu0 0.0
    %234 = vmatprep.subr.mxu0 0.0
    %235 = vmatpush1.msra.mxu0 0.0
    %236 = vmatprep.subr.mxu0 0.0
    %237 = vmatpush1.msra.mxu0 0.0
    %238 = vmatprep.subr.mxu0 0.0
    %239 = vmatpush1.msra.mxu0 0.0
    %240 = vmatprep.subr.mxu0 0.0
    %241 = vmatpush1.msra.mxu0 0.0
    %242 = vmatprep.subr.mxu0 0.0
    %243 = vmatpush1.msra.mxu0 0.0
    %244 = vmatprep.subr.mxu0 0.0
    %245 = vmatpush1.msra.mxu0 0.0
    %246 = vmatprep.subr.mxu0 0.0
    %247 = vmatpush1.msra.mxu0 0.0
    %248 = vmatprep.subr.mxu0 0.0
    %249 = vmatpush1.msra.mxu0 0.0
    %250 = vmatprep.subr.mxu0 0.0
    %251 = vmatpush1.msra.mxu0 0.0
    %252 = vmatprep.subr.mxu0 0.0
    %253 = vmatpush1.msra.mxu0 0.0
    %254 = vmatprep.subr.mxu0 0.0
    %255 = vmatpush1.msra.mxu0 0.0
    %256 = vmatprep.subr.mxu0 0.0
    %257 = vmatpush1.msra.mxu0 0.0
    %258 = vmatprep.subr.mxu0 0.0
    %259 = vmatpush1.msra.mxu0 0.0
    %260 = vmatprep.subr.mxu0 0.0
    %261 = vmatpush1.msra.mxu0 0.0
    %262 = vmatprep.subr.mxu0 0.0
    %263 = vmatpush1.msra.mxu0 0.0
    %264 = vmatprep.mubr.f32.mxu0 0.0
    %265 = vmatmul.mubr.f32.gmra.mrb[0].mxu0 %v198
    %v266 = vpop.f32.mrb[0].mxu0
    %v267 = vadd.f32 0.0, %v266
    %v268 = vpop.f32.mrb[0].mxu0
    %269 = vdwg.mxu0
    %s270 = scalar_lea.vmem [#allocation3], 8
    %271 = vst.msk [vmem:[%s270] sm:$0xff] %vm188, %v267
    // Predicated region
    $region18: #{tpu_custom_call.1} parent=1 // pred_check
      _
    $region19: #{tpu_custom_call.1} parent=1 // pred_check_branch
      %273 = sbr.rel (0) target = $region21
    $region20: #{tpu_custom_call.1} parent=1 // pred_region
      %s275 = ssub.s32 256, 256
      %276 = vsyncadd [#allocation4], %s275
      %s277 = sshll.u32 [#allocation3], 4
      %s278 = int_to_ptr.vmem [resolvable:$true] %s277
      %283 = dma.vmem_to_hbm [thread:$0]  %s278, 256, %s3, [#allocation4], 128, 128, 8
    $region21: #{tpu_custom_call.1} parent=1 // pred_fallthru
      _
    // Predicated region
    $region22: #{tpu_custom_call.1} parent=1 // pred_check
      _
    $region23: #{tpu_custom_call.1} parent=1 // pred_check_branch
      %285 = sbr.rel (0) target = $region25
    $region24: #{tpu_custom_call.1} parent=1 // pred_region
      %286 = dma.done [#allocation4], 256
    $region25: #{tpu_custom_call.1} parent=1 // pred_fallthru
      _
    %287 = vsyncpa [#allocation4], 1

</llo_original>
